<compile_context>
chip_gen: v7x
topology: tpu7x:2x2x1
jax: 0.10.0
libtpu: 0.0.40
codegen_flags: <defaults>
</compile_context>

<pallas_src>
import functools
import math

import jax
import jax.numpy as jnp
from jax.experimental import pallas as pl
from jax.experimental.pallas import tpu as pltpu


def _round_up(x, m):
    return ((x + m - 1) // m) * m


def _pick_groups_per_block(batch, slave_num, target_rows):
    """Largest divisor g of batch with (g*slave_num) % 8 == 0 and <= target_rows."""
    best = None
    for g in range(1, batch + 1):
        if batch % g:
            continue
        rows = g * slave_num
        if rows % 8 == 0 and rows <= max(target_rows, 8):
            best = g
    if best is None:
        best = batch   # single block == full array -> always a legal block shape
    return best


def comm_slave_kernel(obs_ref, h_ref,
                      w_enc_ref, b_enc_ref,
                      w_ih_ref, b_ih_ref,
                      w_hh_ref, b_hh_ref,
                      w_qkv_ref, b_qkv_ref,
                      w_dec_h_ref, w_dec_x_ref, b_dec_ref,
                      out_ref, qkv_scratch,
                      *, n_slaves, attention_dim, hidden_dim, n_actions,
                      groups_per_block):
    f32 = jnp.float32
    H = hidden_dim
    A = attention_dim
    M = n_slaves
    G = groups_per_block

    obs = obs_ref[...]                      # (R, D_in)
    h_in = h_ref[...]                       # (R, H)
    rows = obs.shape[0]

    # ---- encoder -----------------------------------------------------------
    enc = jnp.maximum(
        jnp.dot(obs, w_enc_ref[...], preferred_element_type=f32)
        + b_enc_ref[...], 0.0)                                     # (R, H)

    # ---- GRUCell (torch gate order: r, z, n) -------------------------------
    gi = jnp.dot(enc, w_ih_ref[...], preferred_element_type=f32) + b_ih_ref[...]
    gh = jnp.dot(h_in, w_hh_ref[...], preferred_element_type=f32) + b_hh_ref[...]
    r = jax.nn.sigmoid(gi[:, 0:H] + gh[:, 0:H])
    z = jax.nn.sigmoid(gi[:, H:2 * H] + gh[:, H:2 * H])
    n_g = jnp.tanh(gi[:, 2 * H:3 * H] + r * gh[:, 2 * H:3 * H])
    h_out = (1.0 - z) * n_g + z * h_in                             # (R, H)

    # ---- fused q/k/v projection (1/sqrt(A) already folded into q's weight) --
    qkv = jnp.dot(h_out, w_qkv_ref[...], preferred_element_type=f32) + b_qkv_ref[...]

    c_act = 0
    c_h = n_actions
    c_x = n_actions + H

    out_ref[:, c_h:c_h + H] = h_out

    # ---- block-diagonal attention over the other slaves of the same group ---
    if M > 1:
        qkv_scratch[...] = qkv
        # gather each group's rows into a (G, M, 3A) batch (static ref slices)
        qkv3 = jnp.stack(
            [qkv_scratch[g * M:(g + 1) * M, :] for g in range(G)], axis=0)
        qg = qkv3[:, :, 0:A]
        kg = qkv3[:, :, A:2 * A]
        vg = jnp.maximum(qkv3[:, :, 2 * A:3 * A], 0.0)
        # (G, M, M) scores; contraction on the last axes -> no k transpose
        scores = jnp.einsum('gqd,gkd->gqk', qg, kg, preferred_element_type=f32)
        row = jax.lax.broadcasted_iota(jnp.int32, (G, M, M), 1)
        col = jax.lax.broadcasted_iota(jnp.int32, (G, M, M), 2)
        masked = jnp.where(row == col, -jnp.inf, scores)           # mask self
        mmax = jnp.max(masked, axis=-1, keepdims=True)
        p = jnp.exp(masked - mmax)
        attn = p * pl.reciprocal(jnp.sum(p, axis=-1, keepdims=True), approx=True)
        x3 = jnp.einsum('gqk,gkd->gqd', attn, vg, preferred_element_type=f32)
        for g in range(G):
            out_ref[g * M:(g + 1) * M, c_x:c_x + A] = x3[g]
        x_att = out_ref[:, c_x:c_x + A]                            # (R, A)
    else:
        x_att = jnp.maximum(qkv[:, 2 * A:3 * A], 0.0)
        out_ref[:, c_x:c_x + A] = x_att

    # ---- decoding: cat([h_out, x]) @ W_dec == h_out @ W_h + x @ W_x ----------
    act = (jnp.dot(h_out, w_dec_h_ref[...], preferred_element_type=f32)
           + jnp.dot(x_att, w_dec_x_ref[...], preferred_element_type=f32)
           + b_dec_ref[...])
    out_ref[:, c_act:c_act + n_actions] = act

    used = n_actions + H + A
    pad = out_ref.shape[-1] - used
    if pad > 0:
        out_ref[:, used:] = jnp.zeros((rows, pad), f32)


def comm_slave_forward(obs, hidden_state, params, *,
                       slave_num, attention_dim, hidden_dim, n_actions,
                       target_rows=256):
    obs = obs.astype(jnp.float32)
    N, d_in = obs.shape
    assert N % slave_num == 0, "rows must be batch * slave_num"
    batch = N // slave_num
    H, A = hidden_dim, attention_dim
    h_in = hidden_state.reshape(N, H).astype(jnp.float32)

    # --- fused / pre-scaled parameters (cheap XLA ops, once per call) ---------
    inv_sqrt = jnp.float32(1.0 / math.sqrt(A))
    w_qkv = jnp.concatenate(
        [params["w_q"] * inv_sqrt, params["w_k"], params["w_v"]], axis=1)   # (H, 3A)
    b_qkv = jnp.concatenate(
        [jnp.zeros((1, 2 * A), jnp.float32), params["b_v"]], axis=1)        # (1, 3A)
    w_dec_h = params["w_dec"][:H, :]                                        # (H, n_actions)
    w_dec_x = params["w_dec"][H:, :]                                        # (A, n_actions)

    weights = (params["w_enc"], params["b_enc"],
               params["w_ih"], params["b_ih"],
               params["w_hh"], params["b_hh"],
               w_qkv, b_qkv,
               w_dec_h, w_dec_x, params["b_dec"])

    g = _pick_groups_per_block(batch, slave_num, target_rows)
    row_block = g * slave_num
    grid = (N // row_block,)
    out_w = _round_up(n_actions + H + A, 128)

    rows_map = lambda i: (i, 0)
    rep_map = lambda i: (0, 0)   # same block every step -> weights stay VMEM-resident

    in_specs = ([pl.BlockSpec((row_block, d_in), rows_map),
                 pl.BlockSpec((row_block, H), rows_map)]
                + [pl.BlockSpec(w.shape, rep_map) for w in weights])

    kernel = functools.partial(
        comm_slave_kernel,
        n_slaves=slave_num, attention_dim=A, hidden_dim=H,
        n_actions=n_actions, groups_per_block=g)

    packed = pl.pallas_call(
        kernel,
        out_shape=jax.ShapeDtypeStruct((N, out_w), jnp.float32),
        grid=grid,
        in_specs=in_specs,
        out_specs=pl.BlockSpec((row_block, out_w), rows_map),
        scratch_shapes=[pltpu.VMEM((row_block, 3 * A), jnp.float32)],
        compiler_params=pltpu.CompilerParams(
            dimension_semantics=("parallel",)),
    )(obs, h_in, *weights)

    act = packed[:, :n_actions]
    h_out = packed[:, n_actions:n_actions + H]
    x_att = packed[:, n_actions + H:n_actions + H + A]
    new_h_out = jnp.concatenate([h_out, x_att], axis=-1)
    return act, h_out, new_h_out


# ----------------------- pure-JAX reference (PyTorch semantics) -----------------------
def comm_slave_reference(obs, hidden_state, params, *,
                         slave_num, attention_dim, hidden_dim, n_actions):
    H, A = hidden_dim, attention_dim
    N = obs.shape[0]
    B = N // slave_num
    enc = jax.nn.relu(obs @ params["w_enc"] + params["b_enc"])
    h_in = hidden_state.reshape(N, H)
    gi = enc @ params["w_ih"] + params["b_ih"]
    gh = h_in @ params["w_hh"] + params["b_hh"]
    r = jax.nn.sigmoid(gi[:, :H] + gh[:, :H])
    z = jax.nn.sigmoid(gi[:, H:2 * H] + gh[:, H:2 * H])
    n = jnp.tanh(gi[:, 2 * H:] + r * gh[:, 2 * H:])
    h_out = (1.0 - z) * n + z * h_in
    q = (h_out @ params["w_q"]).reshape(B, slave_num, A)
    k = (h_out @ params["w_k"]).reshape(B, slave_num, A)
    v = jax.nn.relu(h_out @ params["w_v"] + params["b_v"]).reshape(B, slave_num, A)
    xs = []
    if slave_num > 1:
        for i in range(slave_num):
            q_i = q[:, i][:, None, :]                                        # (B,1,A)
            idx = [j for j in range(slave_num) if j != i]
            k_i = jnp.stack([k[:, j] for j in idx], 0).transpose(1, 2, 0)    # (B,A,M-1)
            v_i = jnp.stack([v[:, j] for j in idx], 0).transpose(1, 2, 0)    # (B,A,M-1)
            score = jnp.matmul(q_i, k_i) / math.sqrt(A)                      # (B,1,M-1)
            w = jax.nn.softmax(score, axis=-1)
            xs.append((v_i * w).sum(-1))                                     # (B,A)
    else:
        xs.append(v[:, 0])
    x = jnp.stack(xs, axis=1).reshape(N, A)
    new_h = jnp.concatenate([h_out, x], axis=-1)
    out = new_h @ params["w_dec"] + params["b_dec"]
    return out, h_out, new_h


if __name__ == "__main__":
    # args: input_shape=16, slave_hidden_dim=32, attention_dim=16, slave_num=4, n_actions=8
    INPUT_SHAPE = 16
    HIDDEN = 32
    ATTN = 16
    SLAVE_NUM = 4
    N_ACTIONS = 8
    BATCH = 2
    N = BATCH * SLAVE_NUM

    key = jax.random.PRNGKey(0)
    ks = jax.random.split(key, 16)

    def init(k, shape, scale=0.1):
        return (scale * jax.random.normal(k, shape)).astype(jnp.float32)

    params = {
        "w_enc": init(ks[0], (INPUT_SHAPE, HIDDEN)),
        "b_enc": init(ks[1], (1, HIDDEN)),
        # GRUCell weights pre-transposed to [in, 3H]; gate order r, z, n.
        "w_ih":  init(ks[2], (HIDDEN, 3 * HIDDEN)),
        "b_ih":  init(ks[3], (1, 3 * HIDDEN)),
        "w_hh":  init(ks[4], (HIDDEN, 3 * HIDDEN)),
        "b_hh":  init(ks[5], (1, 3 * HIDDEN)),
        "w_q":   init(ks[6], (HIDDEN, ATTN)),
        "w_k":   init(ks[7], (HIDDEN, ATTN)),
        "w_v":   init(ks[8], (HIDDEN, ATTN)),
        "b_v":   init(ks[9], (1, ATTN)),
        "w_dec": init(ks[10], (HIDDEN + ATTN, N_ACTIONS)),
        "b_dec": init(ks[11], (1, N_ACTIONS)),
    }

    obs = jax.random.normal(ks[12], (N, INPUT_SHAPE), dtype=jnp.float32)
    hidden_state = jax.random.normal(ks[13], (BATCH, SLAVE_NUM, HIDDEN), dtype=jnp.float32)

    kwargs = dict(slave_num=SLAVE_NUM, attention_dim=ATTN,
                  hidden_dim=HIDDEN, n_actions=N_ACTIONS)

    out = comm_slave_forward(obs, hidden_state, params, **kwargs)
    out = jax.block_until_ready(out)

    ref = comm_slave_reference(obs, hidden_state, params, **kwargs)
    for o, rr in zip(out, ref):
        assert o.shape == rr.shape, (o.shape, rr.shape)
        err = float(jnp.max(jnp.abs(o - rr)))
        assert err < 1e-2, err

    # TODO(synk): self.gnn (GCNConv) is constructed in __init__ but never used in
    # forward(), so it is intentionally not translated.
    print("KERNEL_OK")
</pallas_src>

<mosaic_0001>
module attributes {stable_mosaic.version = 11 : i64} {
  func.func @comm_slave_kernel(%arg0: i32, %arg1: memref<8x16xf32, #tpu.memory_space<vmem>>, %arg2: memref<8x32xf32, #tpu.memory_space<vmem>>, %arg3: memref<16x32xf32, #tpu.memory_space<vmem>>, %arg4: memref<1x32xf32, #tpu.memory_space<vmem>>, %arg5: memref<32x96xf32, #tpu.memory_space<vmem>>, %arg6: memref<1x96xf32, #tpu.memory_space<vmem>>, %arg7: memref<32x96xf32, #tpu.memory_space<vmem>>, %arg8: memref<1x96xf32, #tpu.memory_space<vmem>>, %arg9: memref<32x48xf32, #tpu.memory_space<vmem>>, %arg10: memref<1x48xf32, #tpu.memory_space<vmem>>, %arg11: memref<32x8xf32, #tpu.memory_space<vmem>>, %arg12: memref<16x8xf32, #tpu.memory_space<vmem>>, %arg13: memref<1x8xf32, #tpu.memory_space<vmem>>, %arg14: memref<8x128xf32, #tpu.memory_space<vmem>>, %arg15: memref<8x48xf32, #tpu.memory_space<vmem>>) attributes {dimension_semantics = [#tpu.dimension_semantics<parallel>], iteration_bounds = array<i64: 1>, scalar_prefetch = 0 : i64, scratch_operands = 1 : i64, tpu.core_type = #tpu.core_type<tc>, window_params = [{transform_indices = @transform_0, window_bounds = array<i64: 8, 16>}, {transform_indices = @transform_1, window_bounds = array<i64: 8, 32>}, {pipeline_mode = #tpu.pipeline_mode<synchronous>, transform_indices = @transform_2, window_bounds = array<i64: 16, 32>}, {pipeline_mode = #tpu.pipeline_mode<synchronous>, transform_indices = @transform_3, window_bounds = array<i64: 1, 32>}, {pipeline_mode = #tpu.pipeline_mode<synchronous>, transform_indices = @transform_4, window_bounds = array<i64: 32, 96>}, {pipeline_mode = #tpu.pipeline_mode<synchronous>, transform_indices = @transform_5, window_bounds = array<i64: 1, 96>}, {pipeline_mode = #tpu.pipeline_mode<synchronous>, transform_indices = @transform_6, window_bounds = array<i64: 32, 96>}, {pipeline_mode = #tpu.pipeline_mode<synchronous>, transform_indices = @transform_7, window_bounds = array<i64: 1, 96>}, {pipeline_mode = #tpu.pipeline_mode<synchronous>, transform_indices = @transform_8, window_bounds = array<i64: 32, 48>}, {pipeline_mode = #tpu.pipeline_mode<synchronous>, transform_indices = @transform_9, window_bounds = array<i64: 1, 48>}, {pipeline_mode = #tpu.pipeline_mode<synchronous>, transform_indices = @transform_10, window_bounds = array<i64: 32, 8>}, {pipeline_mode = #tpu.pipeline_mode<synchronous>, transform_indices = @transform_11, window_bounds = array<i64: 16, 8>}, {pipeline_mode = #tpu.pipeline_mode<synchronous>, transform_indices = @transform_12, window_bounds = array<i64: 1, 8>}, {transform_indices = @transform_13, window_bounds = array<i64: 8, 128>}]} {
    %c0 = arith.constant 0 : index
    %c0_0 = arith.constant 0 : index
    %0 = vector.load %arg1[%c0, %c0_0] : memref<8x16xf32, #tpu.memory_space<vmem>>, vector<8x16xf32>
    %c0_1 = arith.constant 0 : index
    %c0_2 = arith.constant 0 : index
    %1 = vector.load %arg2[%c0_1, %c0_2] : memref<8x32xf32, #tpu.memory_space<vmem>>, vector<8x32xf32>
    %c0_3 = arith.constant 0 : index
    %c0_4 = arith.constant 0 : index
    %2 = vector.load %arg3[%c0_3, %c0_4] : memref<16x32xf32, #tpu.memory_space<vmem>>, vector<16x32xf32>
    %cst = arith.constant dense<0.000000e+00> : vector<8x32xf32>
    %3 = tpu.matmul %0, %2, %cst {dimension_numbers = #tpu.dot_dimension_numbers<[1], [0], [0], [1], [0, 0, 1, 1], [], []>} : vector<8x16xf32>, vector<16x32xf32>, vector<8x32xf32> -> vector<8x32xf32>
    %c0_5 = arith.constant 0 : index
    %c0_6 = arith.constant 0 : index
    %4 = vector.load %arg4[%c0_5, %c0_6] : memref<1x32xf32, #tpu.memory_space<vmem>>, vector<1x32xf32>
    %5 = vector.broadcast %4 : vector<1x32xf32> to vector<8x32xf32>
    %6 = arith.addf %3, %5 : vector<8x32xf32>
    %cst_7 = arith.constant 0.000000e+00 : f32
    %7 = vector.broadcast %cst_7 : f32 to vector<8x32xf32>
    %8 = arith.maximumf %6, %7 : vector<8x32xf32>
    %c0_8 = arith.constant 0 : index
    %c0_9 = arith.constant 0 : index
    %9 = vector.load %arg5[%c0_8, %c0_9] : memref<32x96xf32, #tpu.memory_space<vmem>>, vector<32x96xf32>
    %cst_10 = arith.constant dense<0.000000e+00> : vector<8x96xf32>
    %10 = tpu.matmul %8, %9, %cst_10 {dimension_numbers = #tpu.dot_dimension_numbers<[1], [0], [0], [1], [0, 0, 1, 1], [], []>} : vector<8x32xf32>, vector<32x96xf32>, vector<8x96xf32> -> vector<8x96xf32>
    %c0_11 = arith.constant 0 : index
    %c0_12 = arith.constant 0 : index
    %11 = vector.load %arg6[%c0_11, %c0_12] : memref<1x96xf32, #tpu.memory_space<vmem>>, vector<1x96xf32>
    %12 = vector.broadcast %11 : vector<1x96xf32> to vector<8x96xf32>
    %13 = arith.addf %10, %12 : vector<8x96xf32>
    %c0_13 = arith.constant 0 : index
    %c0_14 = arith.constant 0 : index
    %14 = vector.load %arg7[%c0_13, %c0_14] : memref<32x96xf32, #tpu.memory_space<vmem>>, vector<32x96xf32>
    %cst_15 = arith.constant dense<0.000000e+00> : vector<8x96xf32>
    %15 = tpu.matmul %1, %14, %cst_15 {dimension_numbers = #tpu.dot_dimension_numbers<[1], [0], [0], [1], [0, 0, 1, 1], [], []>} : vector<8x32xf32>, vector<32x96xf32>, vector<8x96xf32> -> vector<8x96xf32>
    %c0_16 = arith.constant 0 : index
    %c0_17 = arith.constant 0 : index
    %16 = vector.load %arg8[%c0_16, %c0_17] : memref<1x96xf32, #tpu.memory_space<vmem>>, vector<1x96xf32>
    %17 = vector.broadcast %16 : vector<1x96xf32> to vector<8x96xf32>
    %18 = arith.addf %15, %17 : vector<8x96xf32>
    %19 = vector.extract_strided_slice %13 {offsets = [0, 0], sizes = [8, 32], strides = [1, 1]} : vector<8x96xf32> to vector<8x32xf32>
    %20 = vector.extract_strided_slice %18 {offsets = [0, 0], sizes = [8, 32], strides = [1, 1]} : vector<8x96xf32> to vector<8x32xf32>
    %21 = arith.addf %19, %20 : vector<8x32xf32>
    %22 = arith.negf %21 : vector<8x32xf32>
    %23 = math.exp %22 : vector<8x32xf32>
    %cst_18 = arith.constant 1.000000e+00 : f32
    %24 = vector.broadcast %cst_18 : f32 to vector<8x32xf32>
    %25 = arith.addf %24, %23 : vector<8x32xf32>
    %26 = arith.divf %24, %25 : vector<8x32xf32>
    %27 = vector.extract_strided_slice %13 {offsets = [0, 32], sizes = [8, 32], strides = [1, 1]} : vector<8x96xf32> to vector<8x32xf32>
    %28 = vector.extract_strided_slice %18 {offsets = [0, 32], sizes = [8, 32], strides = [1, 1]} : vector<8x96xf32> to vector<8x32xf32>
    %29 = arith.addf %27, %28 : vector<8x32xf32>
    %30 = arith.negf %29 : vector<8x32xf32>
    %31 = math.exp %30 : vector<8x32xf32>
    %cst_19 = arith.constant 1.000000e+00 : f32
    %32 = vector.broadcast %cst_19 : f32 to vector<8x32xf32>
    %33 = arith.addf %32, %31 : vector<8x32xf32>
    %34 = arith.divf %32, %33 : vector<8x32xf32>
    %35 = vector.extract_strided_slice %13 {offsets = [0, 64], sizes = [8, 32], strides = [1, 1]} : vector<8x96xf32> to vector<8x32xf32>
    %36 = vector.extract_strided_slice %18 {offsets = [0, 64], sizes = [8, 32], strides = [1, 1]} : vector<8x96xf32> to vector<8x32xf32>
    %37 = arith.mulf %26, %36 : vector<8x32xf32>
    %38 = arith.addf %35, %37 : vector<8x32xf32>
    %39 = math.tanh %38 : vector<8x32xf32>
    %cst_20 = arith.constant 1.000000e+00 : f32
    %40 = vector.broadcast %cst_20 : f32 to vector<8x32xf32>
    %41 = arith.subf %40, %34 : vector<8x32xf32>
    %42 = arith.mulf %41, %39 : vector<8x32xf32>
    %43 = arith.mulf %34, %1 : vector<8x32xf32>
    %44 = arith.addf %42, %43 : vector<8x32xf32>
    %c0_21 = arith.constant 0 : index
    %c0_22 = arith.constant 0 : index
    %45 = vector.load %arg9[%c0_21, %c0_22] : memref<32x48xf32, #tpu.memory_space<vmem>>, vector<32x48xf32>
    %cst_23 = arith.constant dense<0.000000e+00> : vector<8x48xf32>
    %46 = tpu.matmul %44, %45, %cst_23 {dimension_numbers = #tpu.dot_dimension_numbers<[1], [0], [0], [1], [0, 0, 1, 1], [], []>} : vector<8x32xf32>, vector<32x48xf32>, vector<8x48xf32> -> vector<8x48xf32>
    %c0_24 = arith.constant 0 : index
    %c0_25 = arith.constant 0 : index
    %47 = vector.load %arg10[%c0_24, %c0_25] : memref<1x48xf32, #tpu.memory_space<vmem>>, vector<1x48xf32>
    %48 = vector.broadcast %47 : vector<1x48xf32> to vector<8x48xf32>
    %49 = arith.addf %46, %48 : vector<8x48xf32>
    %c0_26 = arith.constant 0 : index
    %c8 = arith.constant 8 : index
    %50 = vector.load %arg14[%c0_26, %c8] : memref<8x128xf32, #tpu.memory_space<vmem>>, vector<8x32xf32>
    tpu.vector_store %arg14[%c0_26, %c8], %44 {strides = array<i32>} : memref<8x128xf32, #tpu.memory_space<vmem>>, vector<8x32xf32>,
    %c0_27 = arith.constant 0 : index
    %c0_28 = arith.constant 0 : index
    %51 = vector.load %arg15[%c0_27, %c0_28] : memref<8x48xf32, #tpu.memory_space<vmem>>, vector<8x48xf32>
    tpu.vector_store %arg15[%c0_27, %c0_28], %49 {strides = array<i32>} : memref<8x48xf32, #tpu.memory_space<vmem>>, vector<8x48xf32>,
    %c0_29 = arith.constant 0 : index
    %c0_30 = arith.constant 0 : index
    %52 = vector.load %arg15[%c0_29, %c0_30] : memref<8x48xf32, #tpu.memory_space<vmem>>, vector<4x48xf32>
    %c4 = arith.constant 4 : index
    %c0_31 = arith.constant 0 : index
    %53 = vector.load %arg15[%c4, %c0_31] : memref<8x48xf32, #tpu.memory_space<vmem>>, vector<4x48xf32>
    %54 = vector.shape_cast %52 : vector<4x48xf32> to vector<1x4x48xf32>
    %55 = vector.shape_cast %53 : vector<4x48xf32> to vector<1x4x48xf32>
    %56 = tpu.concatenate %54, %55 in 0 : vector<1x4x48xf32>, vector<1x4x48xf32> -> vector<2x4x48xf32>
    %57 = vector.extract_strided_slice %56 {offsets = [0, 0, 0], sizes = [2, 4, 16], strides = [1, 1, 1]} : vector<2x4x48xf32> to vector<2x4x16xf32>
    %58 = vector.extract_strided_slice %56 {offsets = [0, 0, 16], sizes = [2, 4, 16], strides = [1, 1, 1]} : vector<2x4x48xf32> to vector<2x4x16xf32>
    %59 = vector.extract_strided_slice %56 {offsets = [0, 0, 32], sizes = [2, 4, 16], strides = [1, 1, 1]} : vector<2x4x48xf32> to vector<2x4x16xf32>
    %cst_32 = arith.constant 0.000000e+00 : f32
    %60 = vector.broadcast %cst_32 : f32 to vector<2x4x16xf32>
    %61 = arith.maximumf %59, %60 : vector<2x4x16xf32>
    "tpu.trace_start"() <{level = 10 : i32, message = "gqd,gkd->gqk"}> : () -> ()
    %cst_33 = arith.constant dense<0.000000e+00> : vector<2x4x4xf32>
    %62 = tpu.matmul %57, %58, %cst_33 {dimension_numbers = #tpu.dot_dimension_numbers<[2], [2], [1], [1], [0, 0, 0, 1, 1, 1], [0], [0]>} : vector<2x4x16xf32>, vector<2x4x16xf32>, vector<2x4x4xf32> -> vector<2x4x4xf32>
    "tpu.trace_stop"() : () -> ()
    %63 = tpu.iota {dimensions = array<i32: 1>} : vector<2x4x4xi32>
    %64 = tpu.iota {dimensions = array<i32: 2>} : vector<2x4x4xi32>
    %65 = arith.cmpi eq, %63, %64 : vector<2x4x4xi32>
    %cst_34 = arith.constant 0xFF800000 : f32
    %66 = vector.broadcast %cst_34 : f32 to vector<2x4x4xf32>
    %67 = arith.select %65, %66, %62 : vector<2x4x4xi1>, vector<2x4x4xf32>
    %cst_35 = arith.constant dense<0xFF800000> : vector<2x4xf32>
    %68 = vector.multi_reduction <maximumf>, %67, %cst_35 [2] : vector<2x4x4xf32> to vector<2x4xf32>
    %69 = vector.shape_cast %68 : vector<2x4xf32> to vector<2x4x1xf32>
    %70 = vector.broadcast %69 : vector<2x4x1xf32> to vector<2x4x4xf32>
    %71 = arith.subf %67, %70 : vector<2x4x4xf32>
    %72 = math.exp %71 : vector<2x4x4xf32>
    %cst_36 = arith.constant dense<0.000000e+00> : vector<2x4xf32>
    %73 = vector.multi_reduction <add>, %72, %cst_36 [2] : vector<2x4x4xf32> to vector<2x4xf32>
    %74 = vector.shape_cast %73 : vector<2x4xf32> to vector<2x4x1xf32>
    %75 = tpu.reciprocal %74 {approx = true} : vector<2x4x1xf32> -> vector<2x4x1xf32>
    %76 = vector.broadcast %75 : vector<2x4x1xf32> to vector<2x4x4xf32>
    %77 = arith.mulf %72, %76 : vector<2x4x4xf32>
    "tpu.trace_start"() <{level = 10 : i32, message = "gqk,gkd->gqd"}> : () -> ()
    %cst_37 = arith.constant dense<0.000000e+00> : vector<2x4x16xf32>
    %78 = tpu.matmul %77, %61, %cst_37 {dimension_numbers = #tpu.dot_dimension_numbers<[2], [1], [1], [2], [0, 0, 0, 1, 1, 2], [0], [0]>} : vector<2x4x4xf32>, vector<2x4x16xf32>, vector<2x4x16xf32> -> vector<2x4x16xf32>
    "tpu.trace_stop"() : () -> ()
    %79 = vector.extract_strided_slice %78 {offsets = [0, 0, 0], sizes = [1, 4, 16], strides = [1, 1, 1]} : vector<2x4x16xf32> to vector<1x4x16xf32>
    %80 = vector.shape_cast %79 : vector<1x4x16xf32> to vector<4x16xf32>
    %c0_38 = arith.constant 0 : index
    %c40 = arith.constant 40 : index
    %81 = vector.load %arg14[%c0_38, %c40] : memref<8x128xf32, #tpu.memory_space<vmem>>, vector<4x16xf32>
    tpu.vector_store %arg14[%c0_38, %c40], %80 {strides = array<i32>} : memref<8x128xf32, #tpu.memory_space<vmem>>, vector<4x16xf32>,
    %82 = vector.extract_strided_slice %78 {offsets = [1, 0, 0], sizes = [1, 4, 16], strides = [1, 1, 1]} : vector<2x4x16xf32> to vector<1x4x16xf32>
    %83 = vector.shape_cast %82 : vector<1x4x16xf32> to vector<4x16xf32>
    %c4_39 = arith.constant 4 : index
    %c40_40 = arith.constant 40 : index
    %84 = vector.load %arg14[%c4_39, %c40_40] : memref<8x128xf32, #tpu.memory_space<vmem>>, vector<4x16xf32>
    tpu.vector_store %arg14[%c4_39, %c40_40], %83 {strides = array<i32>} : memref<8x128xf32, #tpu.memory_space<vmem>>, vector<4x16xf32>,
    %c0_41 = arith.constant 0 : index
    %c40_42 = arith.constant 40 : index
    %85 = vector.load %arg14[%c0_41, %c40_42] : memref<8x128xf32, #tpu.memory_space<vmem>>, vector<8x16xf32>
    %c0_43 = arith.constant 0 : index
    %c0_44 = arith.constant 0 : index
    %86 = vector.load %arg11[%c0_43, %c0_44] : memref<32x8xf32, #tpu.memory_space<vmem>>, vector<32x8xf32>
    %cst_45 = arith.constant dense<0.000000e+00> : vector<8x8xf32>
    %87 = tpu.matmul %44, %86, %cst_45 {dimension_numbers = #tpu.dot_dimension_numbers<[1], [0], [0], [1], [0, 0, 1, 1], [], []>} : vector<8x32xf32>, vector<32x8xf32>, vector<8x8xf32> -> vector<8x8xf32>
    %c0_46 = arith.constant 0 : index
    %c0_47 = arith.constant 0 : index
    %88 = vector.load %arg12[%c0_46, %c0_47] : memref<16x8xf32, #tpu.memory_space<vmem>>, vector<16x8xf32>
    %cst_48 = arith.constant dense<0.000000e+00> : vector<8x8xf32>
    %89 = tpu.matmul %85, %88, %cst_48 {dimension_numbers = #tpu.dot_dimension_numbers<[1], [0], [0], [1], [0, 0, 1, 1], [], []>} : vector<8x16xf32>, vector<16x8xf32>, vector<8x8xf32> -> vector<8x8xf32>
    %90 = arith.addf %87, %89 : vector<8x8xf32>
    %c0_49 = arith.constant 0 : index
    %c0_50 = arith.constant 0 : index
    %91 = vector.load %arg13[%c0_49, %c0_50] : memref<1x8xf32, #tpu.memory_space<vmem>>, vector<1x8xf32>
    %92 = vector.broadcast %91 : vector<1x8xf32> to vector<8x8xf32>
    %93 = arith.addf %90, %92 : vector<8x8xf32>
    %c0_51 = arith.constant 0 : index
    %c0_52 = arith.constant 0 : index
    %94 = vector.load %arg14[%c0_51, %c0_52] : memref<8x128xf32, #tpu.memory_space<vmem>>, vector<8x8xf32>
    tpu.vector_store %arg14[%c0_51, %c0_52], %93 {strides = array<i32>} : memref<8x128xf32, #tpu.memory_space<vmem>>, vector<8x8xf32>,
    %cst_53 = arith.constant 0.000000e+00 : f32
    %95 = vector.broadcast %cst_53 : f32 to vector<8x72xf32>
    %c0_54 = arith.constant 0 : index
    %c56 = arith.constant 56 : index
    %96 = vector.load %arg14[%c0_54, %c56] : memref<8x128xf32, #tpu.memory_space<vmem>>, vector<8x72xf32>
    tpu.vector_store %arg14[%c0_54, %c56], %95 {strides = array<i32>} : memref<8x128xf32, #tpu.memory_space<vmem>>, vector<8x72xf32>,
    return
  }
  func.func @transform_0(%arg0: i32) -> (i32, i32) {
    %c0_i32 = arith.constant 0 : i32
    %c0_i32_0 = arith.constant 0 : i32
    return %arg0, %c0_i32 : i32, i32
  }
  func.func @transform_1(%arg0: i32) -> (i32, i32) {
    %c0_i32 = arith.constant 0 : i32
    %c0_i32_0 = arith.constant 0 : i32
    return %arg0, %c0_i32 : i32, i32
  }
  func.func @transform_2(%arg0: i32) -> (i32, i32) {
    %c0_i32 = arith.constant 0 : i32
    %c0_i32_0 = arith.constant 0 : i32
    %c0_i32_1 = arith.constant 0 : i32
    return %c0_i32, %c0_i32_0 : i32, i32
  }
  func.func @transform_3(%arg0: i32) -> (i32, i32) {
    %c0_i32 = arith.constant 0 : i32
    %c0_i32_0 = arith.constant 0 : i32
    %c0_i32_1 = arith.constant 0 : i32
    return %c0_i32, %c0_i32_0 : i32, i32
  }
  func.func @transform_4(%arg0: i32) -> (i32, i32) {
    %c0_i32 = arith.constant 0 : i32
    %c0_i32_0 = arith.constant 0 : i32
    %c0_i32_1 = arith.constant 0 : i32
    return %c0_i32, %c0_i32_0 : i32, i32
  }
  func.func @transform_5(%arg0: i32) -> (i32, i32) {
    %c0_i32 = arith.constant 0 : i32
    %c0_i32_0 = arith.constant 0 : i32
    %c0_i32_1 = arith.constant 0 : i32
    return %c0_i32, %c0_i32_0 : i32, i32
  }
  func.func @transform_6(%arg0: i32) -> (i32, i32) {
    %c0_i32 = arith.constant 0 : i32
    %c0_i32_0 = arith.constant 0 : i32
    %c0_i32_1 = arith.constant 0 : i32
    return %c0_i32, %c0_i32_0 : i32, i32
  }
  func.func @transform_7(%arg0: i32) -> (i32, i32) {
    %c0_i32 = arith.constant 0 : i32
    %c0_i32_0 = arith.constant 0 : i32
    %c0_i32_1 = arith.constant 0 : i32
    return %c0_i32, %c0_i32_0 : i32, i32
  }
  func.func @transform_8(%arg0: i32) -> (i32, i32) {
    %c0_i32 = arith.constant 0 : i32
    %c0_i32_0 = arith.constant 0 : i32
    %c0_i32_1 = arith.constant 0 : i32
    return %c0_i32, %c0_i32_0 : i32, i32
  }
  func.func @transform_9(%arg0: i32) -> (i32, i32) {
    %c0_i32 = arith.constant 0 : i32
    %c0_i32_0 = arith.constant 0 : i32
    %c0_i32_1 = arith.constant 0 : i32
    return %c0_i32, %c0_i32_0 : i32, i32
  }
  func.func @transform_10(%arg0: i32) -> (i32, i32) {
    %c0_i32 = arith.constant 0 : i32
    %c0_i32_0 = arith.constant 0 : i32
    %c0_i32_1 = arith.constant 0 : i32
    return %c0_i32, %c0_i32_0 : i32, i32
  }
  func.func @transform_11(%arg0: i32) -> (i32, i32) {
    %c0_i32 = arith.constant 0 : i32
    %c0_i32_0 = arith.constant 0 : i32
    %c0_i32_1 = arith.constant 0 : i32
    return %c0_i32, %c0_i32_0 : i32, i32
  }
  func.func @transform_12(%arg0: i32) -> (i32, i32) {
    %c0_i32 = arith.constant 0 : i32
    %c0_i32_0 = arith.constant 0 : i32
    %c0_i32_1 = arith.constant 0 : i32
    return %c0_i32, %c0_i32_0 : i32, i32
  }
  func.func @transform_13(%arg0: i32) -> (i32, i32) {
    %c0_i32 = arith.constant 0 : i32
    %c0_i32_0 = arith.constant 0 : i32
    return %arg0, %c0_i32 : i32, i32
  }
}

</mosaic_0001>

<llo_original>
// kernel: tpu_custom_call.1
$region0: #{tpu_custom_call.1}
  #allocation0 [shape = 'u32[]', space=smem, size = 0x4, offset = 0x4, fixed_abs, tag = 'smem constant byte address 0x4 - core index']
  #allocation1 [shape = 'u32[144,128]{1,0:T(1,128)}', space=vmem, size = 0x12000, scoped, tag = 'internal scratch']
  #allocation2 [shape = 'f32[8,48]{1,0:T(8,128)}', space=vmem, size = 0x1000, scoped, tag = 'scratch operand']
  %s0 = inlined_call_operand.hbm [shape: f32[8,16], index: 0, kind: input, shape index: {}]
  %s1 = inlined_call_operand.hbm [shape: f32[8,32], index: 1, kind: input, shape index: {}]
  %s2 = inlined_call_operand.hbm [shape: f32[16,32], index: 2, kind: input, shape index: {}]
  %s3 = inlined_call_operand.vmem [shape: f32[1,32], index: 3, kind: input, shape index: {}]
  %s4 = inlined_call_operand.vmem [shape: f32[32,96], index: 4, kind: input, shape index: {}]
  %s5 = inlined_call_operand.vmem [shape: f32[1,96], index: 5, kind: input, shape index: {}]
  %s6 = inlined_call_operand.vmem [shape: f32[32,96], index: 6, kind: input, shape index: {}]
  %s7 = inlined_call_operand.vmem [shape: f32[1,96], index: 7, kind: input, shape index: {}]
  %s8 = inlined_call_operand.hbm [shape: f32[32,48], index: 8, kind: input, shape index: {}]
  %s9 = inlined_call_operand.vmem [shape: f32[1,48], index: 9, kind: input, shape index: {}]
  %s10 = inlined_call_operand.vmem [shape: f32[32,8], index: 10, kind: input, shape index: {}]
  %s11 = inlined_call_operand.vmem [shape: f32[16,8], index: 11, kind: input, shape index: {}]
  %s12 = inlined_call_operand.vmem [shape: f32[1,8], index: 12, kind: input, shape index: {}]
  %s13 = inlined_call_operand.hbm [shape: f32[8,128], index: 13, kind: output, shape index: {}]
  %s14 = sld [smem:[#allocation0]]
  $region78: #{tpu_custom_call.1} parent=0
    _
  %s16 = ssub.s32 1, %s14
  %s17 = scalar_select 0, %s16, %s14
  $region1: #{tpu_custom_call.1} parent=0
    #allocation3 [shape = 'u8[4096]{0}', space=vmem, size = 0x1000, scoped, tag = 'input window, operand 0, single buffered']
    #allocation4 [shape = 's32[1]{0}', space=sflag, size = 0x4, scoped, tag = 'scoped memory for tpu_custom_call.1']
    #allocation5 [shape = 's32[1]{0}', space=sflag, size = 0x4, scoped, tag = 'scoped memory for tpu_custom_call.1']
    #allocation6 [shape = 'u8[4096]{0}', space=vmem, size = 0x1000, scoped, tag = 'input window, operand 1, single buffered']
    #allocation7 [shape = 's32[1]{0}', space=sflag, size = 0x4, scoped, tag = 'scoped memory for tpu_custom_call.1']
    #allocation8 [shape = 'u8[8192]{0}', space=vmem, size = 0x2000, scoped, tag = 'input window, operand 2, single buffered']
    #allocation9 [shape = 'u8[16384]{0}', space=vmem, size = 0x4000, scoped, tag = 'input window, operand 8, single buffered']
    #allocation10 [shape = 's32[1]{0}', space=sflag, size = 0x4, scoped, tag = 'scoped memory for tpu_custom_call.1']
    #allocation11 [shape = 'u8[4096]{0}', space=vmem, size = 0x1000, scoped, tag = 'output window, operand 0, single buffered']
    %18 = vsyncpa [#allocation4], 0
    %19 = vsyncpa [#allocation7], 0
    %20 = vsyncpa [#allocation10], 0
    %21 = vsyncpa [#allocation5], 0
    // Predicated region
    $region2: #{tpu_custom_call.1} parent=1 // pred_check
      _
    $region3: #{tpu_custom_call.1} parent=1 // pred_check_branch
      %23 = sbr.rel (0) target = $region5
    $region4: #{tpu_custom_call.1} parent=1 // pred_region
      %s25 = ssub.s32 128, 128
      %26 = vsyncadd [#allocation4], %s25
      %s28 = sshll.u32 [#allocation3], 4
      %s29 = int_to_ptr.vmem [resolvable:$true] %s28
      %31 = dma.hbm_to_vmem [thread:$0]  %s0, 128, %s29, [#allocation4]
    $region5: #{tpu_custom_call.1} parent=1 // pred_fallthru
      _
    // Predicated region
    $region6: #{tpu_custom_call.1} parent=1 // pred_check
      _
    $region7: #{tpu_custom_call.1} parent=1 // pred_check_branch
      %33 = sbr.rel (0) target = $region9
    $region8: #{tpu_custom_call.1} parent=1 // pred_region
      %s35 = ssub.s32 128, 128
      %36 = vsyncadd [#allocation7], %s35
      %s38 = sshll.u32 [#allocation6], 4
      %s39 = int_to_ptr.vmem [resolvable:$true] %s38
      %41 = dma.hbm_to_vmem [thread:$0]  %s1, 128, %s39, [#allocation7]
    $region9: #{tpu_custom_call.1} parent=1 // pred_fallthru
      _
    // Predicated region
    $region10: #{tpu_custom_call.1} parent=1 // pred_check
      _
    $region11: #{tpu_custom_call.1} parent=1 // pred_check_branch
      %43 = sbr.rel (0) target = $region13
    $region12: #{tpu_custom_call.1} parent=1 // pred_region
      %s45 = ssub.s32 256, 256
      %46 = vsyncadd [#allocation7], %s45
      %s47 = sshll.u32 [#allocation8], 4
      %s48 = int_to_ptr.vmem [resolvable:$true] %s47
      %53 = dma.hbm_to_vmem [thread:$0]  %s2, 256, %s48, [#allocation7], 128, 128, 8
    $region13: #{tpu_custom_call.1} parent=1 // pred_fallthru
      _
    // Predicated region
    $region14: #{tpu_custom_call.1} parent=1 // pred_check
      _
    $region15: #{tpu_custom_call.1} parent=1 // pred_check_branch
      %55 = sbr.rel (0) target = $region17
    $region16: #{tpu_custom_call.1} parent=1 // pred_region
      _
    $region17: #{tpu_custom_call.1} parent=1 // pred_fallthru
      _
    // Predicated region
    $region18: #{tpu_custom_call.1} parent=1 // pred_check
      _
    $region19: #{tpu_custom_call.1} parent=1 // pred_check_branch
      %57 = sbr.rel (0) target = $region21
    $region20: #{tpu_custom_call.1} parent=1 // pred_region
      _
    $region21: #{tpu_custom_call.1} parent=1 // pred_fallthru
      _
    // Predicated region
    $region22: #{tpu_custom_call.1} parent=1 // pred_check
      _
    $region23: #{tpu_custom_call.1} parent=1 // pred_check_branch
      %59 = sbr.rel (0) target = $region25
    $region24: #{tpu_custom_call.1} parent=1 // pred_region
      _
    $region25: #{tpu_custom_call.1} parent=1 // pred_fallthru
      _
    // Predicated region
    $region26: #{tpu_custom_call.1} parent=1 // pred_check
      _
    $region27: #{tpu_custom_call.1} parent=1 // pred_check_branch
      %61 = sbr.rel (0) target = $region29
    $region28: #{tpu_custom_call.1} parent=1 // pred_region
      _
    $region29: #{tpu_custom_call.1} parent=1 // pred_fallthru
      _
    // Predicated region
    $region30: #{tpu_custom_call.1} parent=1 // pred_check
      _
    $region31: #{tpu_custom_call.1} parent=1 // pred_check_branch
      %63 = sbr.rel (0) target = $region33
    $region32: #{tpu_custom_call.1} parent=1 // pred_region
      _
    $region33: #{tpu_custom_call.1} parent=1 // pred_fallthru
      _
    // Predicated region
    $region34: #{tpu_custom_call.1} parent=1 // pred_check
      _
    $region35: #{tpu_custom_call.1} parent=1 // pred_check_branch
      %65 = sbr.rel (0) target = $region37
    $region36: #{tpu_custom_call.1} parent=1 // pred_region
      %s67 = ssub.s32 512, 512
      %68 = vsyncadd [#allocation10], %s67
      %s69 = sshll.u32 [#allocation9], 4
      %s70 = int_to_ptr.vmem [resolvable:$true] %s69
      %75 = dma.hbm_to_vmem [thread:$0]  %s8, 512, %s70, [#allocation10], 128, 128, 8
    $region37: #{tpu_custom_call.1} parent=1 // pred_fallthru
      _
    // Predicated region
    $region38: #{tpu_custom_call.1} parent=1 // pred_check
      _
    $region39: #{tpu_custom_call.1} parent=1 // pred_check_branch
      %77 = sbr.rel (0) target = $region41
    $region40: #{tpu_custom_call.1} parent=1 // pred_region
      _
    $region41: #{tpu_custom_call.1} parent=1 // pred_fallthru
      _
    // Predicated region
    $region42: #{tpu_custom_call.1} parent=1 // pred_check
      _
    $region43: #{tpu_custom_call.1} parent=1 // pred_check_branch
      %79 = sbr.rel (0) target = $region45
    $region44: #{tpu_custom_call.1} parent=1 // pred_region
      _
    $region45: #{tpu_custom_call.1} parent=1 // pred_fallthru
      _
    // Predicated region
    $region46: #{tpu_custom_call.1} parent=1 // pred_check
      _
    $region47: #{tpu_custom_call.1} parent=1 // pred_check_branch
      %81 = sbr.rel (0) target = $region49
    $region48: #{tpu_custom_call.1} parent=1 // pred_region
      _
    $region49: #{tpu_custom_call.1} parent=1 // pred_fallthru
      _
    // Predicated region
    $region50: #{tpu_custom_call.1} parent=1 // pred_check
      _
    $region51: #{tpu_custom_call.1} parent=1 // pred_check_branch
      %83 = sbr.rel (0) target = $region53
    $region52: #{tpu_custom_call.1} parent=1 // pred_region
      _
    $region53: #{tpu_custom_call.1} parent=1 // pred_fallthru
      _
    // Predicated region
    $region54: #{tpu_custom_call.1} parent=1 // pred_check
      _
    $region55: #{tpu_custom_call.1} parent=1 // pred_check_branch
      %85 = sbr.rel (0) target = $region57
    $region56: #{tpu_custom_call.1} parent=1 // pred_region
      %86 = dma.done [#allocation4], 128
    $region57: #{tpu_custom_call.1} parent=1 // pred_fallthru
      _
    // Predicated region
    $region58: #{tpu_custom_call.1} parent=1 // pred_check
      _
    $region59: #{tpu_custom_call.1} parent=1 // pred_check_branch
      %88 = sbr.rel (0) target = $region61
    $region60: #{tpu_custom_call.1} parent=1 // pred_region
      %89 = dma.done [#allocation7], 128
    $region61: #{tpu_custom_call.1} parent=1 // pred_fallthru
      _
    // Predicated region
    $region62: #{tpu_custom_call.1} parent=1 // pred_check
      _
    $region63: #{tpu_custom_call.1} parent=1 // pred_check_branch
      %91 = sbr.rel (0) target = $region65
    $region64: #{tpu_custom_call.1} parent=1 // pred_region
      %92 = dma.done [#allocation7], 256
    $region65: #{tpu_custom_call.1} parent=1 // pred_fallthru
      _
    // Predicated region
    $region66: #{tpu_custom_call.1} parent=1 // pred_check
      _
    $region67: #{tpu_custom_call.1} parent=1 // pred_check_branch
      %94 = sbr.rel (0) target = $region69
    $region68: #{tpu_custom_call.1} parent=1 // pred_region
      %95 = dma.done [#allocation10], 512
    $region69: #{tpu_custom_call.1} parent=1 // pred_fallthru
      _
    %v96 = vld [vmem:[#allocation3] sm:$0xff]
    %v97 = vld [vmem:[#allocation6] sm:$0xff]
    %v98 = vld [vmem:[#allocation8] sm:$0xff]
    %v99 = vld [vmem:[#allocation8 + $0x8] sm:$0xff]
    %v100 = vld [vmem:[%s3] sm:$0x1]
    %v102 = vlaneseq
    %v103 = vshrl.u32 %v102, 7
    %v104 = vsub.s32 0, %v103
    %v105 = vrot.slane %v100, %v104
    %vm107 = vcmask 130048
    %v109 = vsel %vm107, %v96, 0
    %111 = vmatprep.subr.mxu0 0.0
    %112 = vmatpush1.msra.mxu0 %v98
    %113 = vmatprep.subr.mxu0 0.0
    %114 = vmatpush1.msra.mxu0 %v99
    %115 = vmatprep.subr.mxu0 0.0
    %116 = vmatpush1.msra.mxu0 0.0
    %117 = vmatprep.subr.mxu0 0.0
    %118 = vmatpush1.msra.mxu0 0.0
    %119 = vmatprep.subr.mxu0 0.0
    %120 = vmatpush1.msra.mxu0 0.0
    %121 = vmatprep.subr.mxu0 0.0
    %122 = vmatpush1.msra.mxu0 0.0
    %123 = vmatprep.subr.mxu0 0.0
    %124 = vmatpush1.msra.mxu0 0.0
    %125 = vmatprep.subr.mxu0 0.0
    %126 = vmatpush1.msra.mxu0 0.0
    %127 = vmatprep.subr.mxu0 0.0
    %128 = vmatpush1.msra.mxu0 0.0
    %129 = vmatprep.subr.mxu0 0.0
    %130 = vmatpush1.msra.mxu0 0.0
    %131 = vmatprep.subr.mxu0 0.0
    %132 = vmatpush1.msra.mxu0 0.0
    %133 = vmatprep.subr.mxu0 0.0
    %134 = vmatpush1.msra.mxu0 0.0
    %135 = vmatprep.subr.mxu0 0.0
    %136 = vmatpush1.msra.mxu0 0.0
    %137 = vmatprep.subr.mxu0 0.0
    %138 = vmatpush1.msra.mxu0 0.0
    %139 = vmatprep.subr.mxu0 0.0
    %140 = vmatpush1.msra.mxu0 0.0
    %141 = vmatprep.subr.mxu0 0.0
    %142 = vmatpush1.msra.mxu0 0.0
    %143 = vmatprep.subr.mxu0 0.0
    %144 = vmatpush1.msra.mxu0 0.0
    %145 = vmatprep.subr.mxu0 0.0
    %146 = vmatpush1.msra.mxu0 0.0
    %147 = vmatprep.subr.mxu0 0.0
    %148 = vmatpush1.msra.mxu0 0.0
    %149 = vmatprep.subr.mxu0 0.0
    %150 = vmatpush1.msra.mxu0 0.0
    %151 = vmatprep.subr.mxu0 0.0
    %152 = vmatpush1.msra.mxu0 0.0
    %153 = vmatprep.subr.mxu0 0.0
    %154 = vmatpush1.msra.mxu0 0.0
    %155 = vmatprep.subr.mxu0 0.0
    %156 = vmatpush1.msra.mxu0 0.0
    %157 = vmatprep.subr.mxu0 0.0
    %158 = vmatpush1.msra.mxu0 0.0
    %159 = vmatprep.subr.mxu0 0.0
    %160 = vmatpush1.msra.mxu0 0.0
    %161 = vmatprep.subr.mxu0 0.0
    %162 = vmatpush1.msra.mxu0 0.0
    %163 = vmatprep.subr.mxu0 0.0
    %164 = vmatpush1.msra.mxu0 0.0
    %165 = vmatprep.subr.mxu0 0.0
    %166 = vmatpush1.msra.mxu0 0.0
    %167 = vmatprep.subr.mxu0 0.0
    %168 = vmatpush1.msra.mxu0 0.0
    %169 = vmatprep.subr.mxu0 0.0
    %170 = vmatpush1.msra.mxu0 0.0
    %171 = vmatprep.subr.mxu0 0.0
    %172 = vmatpush1.msra.mxu0 0.0
    %173 = vmatprep.subr.mxu0 0.0
    %174 = vmatpush1.msra.mxu0 0.0
    %175 = vmatprep.mubr.f32.mxu0 0.0
    %176 = vmatmul.mubr.f32.gmra.mrb[0].mxu0 %v109
    %v177 = vpop.f32.mrb[0].mxu0
    %v178 = vadd.f32 %v105, %v177
    %v179 = vpop.f32.mrb[0].mxu0
    %180 = vdwg.mxu0
    %v181 = vmax.f32 %v178, 0.0
    %v182 = vld [vmem:[%s4] sm:$0xff]
    %v183 = vld [vmem:[%s4 + $0x8] sm:$0xff]
    %v184 = vld [vmem:[%s4 + $0x10] sm:$0xff]
    %v185 = vld [vmem:[%s4 + $0x18] sm:$0xff]
    %v186 = vld [vmem:[%s5] sm:$0x1]
    %v188 = vlaneseq
    %v189 = vshrl.u32 %v188, 7
    %v190 = vsub.s32 0, %v189
    %v191 = vrot.slane %v186, %v190
    %vm193 = vcmask 261120
    %v195 = vsel %vm193, %v181, 0
    %197 = vmatprep.subr.mxu0 0.0
    %198 = vmatpush1.msra.mxu0 %v182
    %199 = vmatprep.subr.mxu0 0.0
    %200 = vmatpush1.msra.mxu0 %v183
    %201 = vmatprep.subr.mxu0 0.0
    %202 = vmatpush1.msra.mxu0 %v184
    %203 = vmatprep.subr.mxu0 0.0
    %204 = vmatpush1.msra.mxu0 %v185
    %205 = vmatprep.subr.mxu0 0.0
    %206 = vmatpush1.msra.mxu0 0.0
    %207 = vmatprep.subr.mxu0 0.0
    %208 = vmatpush1.msra.mxu0 0.0
    %209 = vmatprep.subr.mxu0 0.0
    %210 = vmatpush1.msra.mxu0 0.0
    %211 = vmatprep.subr.mxu0 0.0
    %212 = vmatpush1.msra.mxu0 0.0
    %213 = vmatprep.subr.mxu0 0.0
    %214 = vmatpush1.msra.mxu0 0.0
    %215 = vmatprep.subr.mxu0 0.0
    %216 = vmatpush1.msra.mxu0 0.0
    %217 = vmatprep.subr.mxu0 0.0
    %218 = vmatpush1.msra.mxu0 0.0
    %219 = vmatprep.subr.mxu0 0.0
    %220 = vmatpush1.msra.mxu0 0.0
    %221 = vmatprep.subr.mxu0 0.0
    %222 = vmatpush1.msra.mxu0 0.0
    %223 = vmatprep.subr.mxu0 0.0
    %224 = vmatpush1.msra.mxu0 0.0
    %225 = vmatprep.subr.mxu0 0.0
    %226 = vmatpush1.msra.mxu0 0.0
    %227 = vmatprep.subr.mxu0 0.0
    %228 = vmatpush1.msra.mxu0 0.0
    %229 = vmatprep.subr.mxu0 0.0
    %230 = vmatpush1.msra.mxu0 0.0
    %231 = vmatprep.subr.mxu0 0.0
    %232 = vmatpush1.msra.mxu0 0.0
    %233 = vmatprep.subr.mxu0 0.0
    %234 = vmatpush1.msra.mxu0 0.0
    %235 = vmatprep.subr.mxu0 0.0
    %236 = vmatpush1.msra.mxu0 0.0
    %237 = vmatprep.subr.mxu0 0.0
    %238 = vmatpush1.msra.mxu0 0.0
    %239 = vmatprep.subr.mxu0 0.0
    %240 = vmatpush1.msra.mxu0 0.0
    %241 = vmatprep.subr.mxu0 0.0
    %242 = vmatpush1.msra.mxu0 0.0
    %243 = vmatprep.subr.mxu0 0.0
    %244 = vmatpush1.msra.mxu0 0.0
    %245 = vmatprep.subr.mxu0 0.0
    %246 = vmatpush1.msra.mxu0 0.0
    %247 = vmatprep.subr.mxu0 0.0
    %248 = vmatpush1.msra.mxu0 0.0
    %249 = vmatprep.subr.mxu0 0.0
    %250 = vmatpush1.msra.mxu0 0.0
    %251 = vmatprep.subr.mxu0 0.0
    %252 = vmatpush1.msra.mxu0 0.0
    %253 = vmatprep.subr.mxu0 0.0
    %254 = vmatpush1.msra.mxu0 0.0
    %255 = vmatprep.subr.mxu0 0.0
    %256 = vmatpush1.msra.mxu0 0.0
    %257 = vmatprep.subr.mxu0 0.0
    %258 = vmatpush1.msra.mxu0 0.0
    %259 = vmatprep.subr.mxu0 0.0
    %260 = vmatpush1.msra.mxu0 0.0
    %261 = vmatprep.mubr.f32.mxu0 0.0
    %262 = vmatmul.mubr.f32.gmra.mrb[0].mxu0 %v195
    %v263 = vpop.f32.mrb[0].mxu0
    %v264 = vadd.f32 %v191, %v263
    %v265 = vpop.f32.mrb[0].mxu0
    %266 = vdwg.mxu0
    %v267 = vld [vmem:[%s6] sm:$0xff]
    %v268 = vld [vmem:[%s6 + $0x8] sm:$0xff]
    %v269 = vld [vmem:[%s6 + $0x10] sm:$0xff]
    %v270 = vld [vmem:[%s6 + $0x18] sm:$0xff]
    %v271 = vld [vmem:[%s7] sm:$0x1]
    %v273 = vlaneseq
    %v274 = vshrl.u32 %v273, 7
    %v275 = vsub.s32 0, %v274
    %v276 = vrot.slane %v271, %v275
    %v279 = vsel %vm193, %v97, 0
    %281 = vmatprep.subr.mxu0 0.0
    %282 = vmatpush1.msra.mxu0 %v267
    %283 = vmatprep.subr.mxu0 0.0
    %284 = vmatpush1.msra.mxu0 %v268
    %285 = vmatprep.subr.mxu0 0.0
    %286 = vmatpush1.msra.mxu0 %v269
    %287 = vmatprep.subr.mxu0 0.0
    %288 = vmatpush1.msra.mxu0 %v270
    %289 = vmatprep.subr.mxu0 0.0
    %290 = vmatpush1.msra.mxu0 0.0
    %291 = vmatprep.subr.mxu0 0.0
    %292 = vmatpush1.msra.mxu0 0.0
    %293 = vmatprep.subr.mxu0 0.0
    %294 = vmatpush1.msra.mxu0 0.0
    %295 = vmatprep.subr.mxu0 0.0
    %296 = vmatpush1.msra.mxu0 0.0
    %297 = vmatprep.subr.mxu0 0.0
    %298 = vmatpush1.msra.mxu0 0.0
    %299 = vmatprep.subr.mxu0 0.0
    %300 = vmatpush1.msra.mxu0 0.0
    %301 = vmatprep.subr.mxu0 0.0
    %302 = vmatpush1.msra.mxu0 0.0
    %303 = vmatprep.subr.mxu0 0.0
    %304 = vmatpush1.msra.mxu0 0.0
    %305 = vmatprep.subr.mxu0 0.0
    %306 = vmatpush1.msra.mxu0 0.0
    %307 = vmatprep.subr.mxu0 0.0
    %308 = vmatpush1.msra.mxu0 0.0
    %309 = vmatprep.subr.mxu0 0.0
    %310 = vmatpush1.msra.mxu0 0.0
    %311 = vmatprep.subr.mxu0 0.0
    %312 = vmatpush1.msra.mxu0 0.0
    %313 = vmatprep.subr.mxu0 0.0
    %314 = vmatpush1.msra.mxu0 0.0
    %315 = vmatprep.subr.mxu0 0.0
    %316 = vmatpush1.msra.mxu0 0.0
    %317 = vmatprep.subr.mxu0 0.0
    %318 = vmatpush1.msra.mxu0 0.0
    %319 = vmatprep.subr.mxu0 0.0
    %320 = vmatpush1.msra.mxu0 0.0
    %321 = vmatprep.subr.mxu0 0.0
    %322 = vmatpush1.msra.mxu0 0.0
    %323 = vmatprep.subr.mxu0 0.0
    %324 = vmatpush1.msra.mxu0 0.0
    %325 = vmatprep.subr.mxu0 0.0
    %326 = vmatpush1.msra.mxu0 0.0
    %327 = vmatprep.subr.mxu0 0.0
    %328 = vmatpush1.msra.mxu0 0.0
    %329 = vmatprep.subr.mxu0 0.0
    %330 = vmatpush1.msra.mxu0 0.0
    %331 = vmatprep.subr.mxu0 0.0
    %332 = vmatpush1.msra.mxu0 0.0
    %333 = vmatprep.subr.mxu0 0.0
    %334 = vmatpush1.msra.mxu0 0.0
    %335 = vmatprep.subr.mxu0 0.0
    %336 = vmatpush1.msra.mxu0 0.0
    %337 = vmatprep.subr.mxu0 0.0
    %338 = vmatpush1.msra.mxu0 0.0
    %339 = vmatprep.subr.mxu0 0.0
    %340 = vmatpush1.msra.mxu0 0.0
    %341 = vmatprep.subr.mxu0 0.0
    %342 = vmatpush1.msra.mxu0 0.0
    %343 = vmatprep.subr.mxu0 0.0
    %344 = vmatpush1.msra.mxu0 0.0
    %345 = vmatprep.mubr.f32.mxu0 0.0
    %346 = vmatmul.mubr.f32.gmra.mrb[0].mxu0 %v279
    %v347 = vpop.f32.mrb[0].mxu0
    %v348 = vadd.f32 %v276, %v347
    %v349 = vpop.f32.mrb[0].mxu0
    %350 = vdwg.mxu0
    %v351 = vadd.f32 %v264, %v348
    %v352 = vxor.u32 %v351, 2147483648
    %v353 = vmul.f32 %v352, 1.442695
    %v354 = vpow.pop %v353
    %v355 = vadd.f32 %v354, 1.0
    %v356 = vrcp.pop %v355
    %v357 = vmul.f32 1.0, %v356
    %359 = vrot.lane.b32.xlu0 %v348, 64
    %v360 = vpop.permute.xlu0 %359
    %v362 = vmul.f32 %v357, %v360
    %364 = vrot.lane.b32.xlu0 %v362, 64
    %v365 = vpop.permute.xlu0 %364
    %v367 = vadd.f32 %v264, %v365
    %v368 = vtanh.pop %v367
    %v369 = vsub.f32 1.0, %v357
    %371 = vrot.lane.b32.xlu0 %v368, 96
    %v372 = vpop.permute.xlu0 %371
    %v374 = vmul.f32 %v369, %v372
    %375 = vrot.lane.b32.xlu0 %v97, 32
    %v376 = vpop.permute.xlu0 %375
    %v378 = vmul.f32 %v357, %v376
    %v379 = vadd.f32 %v374, %v378
    %v380 = vld [vmem:[#allocation9] sm:$0xff]
    %v381 = vld [vmem:[#allocation9 + $0x8] sm:$0xff]
    %v382 = vld [vmem:[#allocation9 + $0x10] sm:$0xff]
    %v383 = vld [vmem:[#allocation9 + $0x18] sm:$0xff]
    %v384 = vld [vmem:[%s9] sm:$0x1]
    %v386 = vlaneseq
    %v387 = vshrl.u32 %v386, 7
    %v388 = vsub.s32 0, %v387
    %v389 = vrot.slane %v384, %v388
    %392 = vrot.lane.b32.xlu0 %v379, 96
    %v393 = vpop.permute.xlu0 %392
    %v394 = vsel %vm193, %v393, 0
    %396 = vmatprep.subr.mxu0 0.0
    %397 = vmatpush1.msra.mxu0 %v380
    %398 = vmatprep.subr.mxu0 0.0
    %399 = vmatpush1.msra.mxu0 %v381
    %400 = vmatprep.subr.mxu0 0.0
    %401 = vmatpush1.msra.mxu0 %v382
    %402 = vmatprep.subr.mxu0 0.0
    %403 = vmatpush1.msra.mxu0 %v383
    %404 = vmatprep.subr.mxu0 0.0
    %405 = vmatpush1.msra.mxu0 0.0
    %406 = vmatprep.subr.mxu0 0.0
    %407 = vmatpush1.msra.mxu0 0.0
    %408 = vmatprep.subr.mxu0 0.0
    %409 = vmatpush1.msra.mxu0 0.0
    %410 = vmatprep.subr.mxu0 0.0
    %411 = vmatpush1.msra.mxu0 0.0
    %412 = vmatprep.subr.mxu0 0.0
    %413 = vmatpush1.msra.mxu0 0.0
    %414 = vmatprep.subr.mxu0 0.0
    %415 = vmatpush1.msra.mxu0 0.0
    %416 = vmatprep.subr.mxu0 0.0
    %417 = vmatpush1.msra.mxu0 0.0
    %418 = vmatprep.subr.mxu0 0.0
    %419 = vmatpush1.msra.mxu0 0.0
    %420 = vmatprep.subr.mxu0 0.0
    %421 = vmatpush1.msra.mxu0 0.0
    %422 = vmatprep.subr.mxu0 0.0
    %423 = vmatpush1.msra.mxu0 0.0
    %424 = vmatprep.subr.mxu0 0.0
    %425 = vmatpush1.msra.mxu0 0.0
    %426 = vmatprep.subr.mxu0 0.0
    %427 = vmatpush1.msra.mxu0 0.0
    %428 = vmatprep.subr.mxu0 0.0
    %429 = vmatpush1.msra.mxu0 0.0
    %430 = vmatprep.subr.mxu0 0.0
    %431 = vmatpush1.msra.mxu0 0.0
    %432 = vmatprep.subr.mxu0 0.0
    %433 = vmatpush1.msra.mxu0 0.0
    %434 = vmatprep.subr.mxu0 0.0
    %435 = vmatpush1.msra.mxu0 0.0
    %436 = vmatprep.subr.mxu0 0.0
    %437 = vmatpush1.msra.mxu0 0.0
    %438 = vmatprep.subr.mxu0 0.0
    %439 = vmatpush1.msra.mxu0 0.0
    %440 = vmatprep.subr.mxu0 0.0
    %441 = vmatpush1.msra.mxu0 0.0
    %442 = vmatprep.subr.mxu0 0.0
    %443 = vmatpush1.msra.mxu0 0.0
    %444 = vmatprep.subr.mxu0 0.0
    %445 = vmatpush1.msra.mxu0 0.0
    %446 = vmatprep.subr.mxu0 0.0
    %447 = vmatpush1.msra.mxu0 0.0
    %448 = vmatprep.subr.mxu0 0.0
    %449 = vmatpush1.msra.mxu0 0.0
    %450 = vmatprep.subr.mxu0 0.0
    %451 = vmatpush1.msra.mxu0 0.0
    %452 = vmatprep.subr.mxu0 0.0
    %453 = vmatpush1.msra.mxu0 0.0
    %454 = vmatprep.subr.mxu0 0.0
    %455 = vmatpush1.msra.mxu0 0.0
    %456 = vmatprep.subr.mxu0 0.0
    %457 = vmatpush1.msra.mxu0 0.0
    %458 = vmatprep.subr.mxu0 0.0
    %459 = vmatpush1.msra.mxu0 0.0
    %460 = vmatprep.mubr.f32.mxu0 0.0
    %461 = vmatmul.mubr.f32.gmra.mrb[0].mxu0 %v394
    %v462 = vpop.f32.mrb[0].mxu0
    %v463 = vadd.f32 %v389, %v462
    %v464 = vpop.f32.mrb[0].mxu0
    %465 = vdwg.mxu0
    %466 = vrot.lane.b32.xlu0 %v379, 104
    %v467 = vpop.permute.xlu0 %466
    %vm469 = vcmask 326720
    %470 = vst.msk [vmem:[#allocation11] sm:$0xff] %vm469, %v467
    %vm471 = vcmask 392192
    %472 = vst.msk [vmem:[#allocation2] sm:$0xff] %vm471, %v463
    %v473 = vld [vmem:[#allocation2] sm:$0xf]
    %v474 = vld [vmem:[#allocation2 + $0x4] sm:$0xf]
    %v475 = vmax.f32 %v473, 0.0
    %v476 = vmax.f32 %v474, 0.0
    %478 = vrot.lane.b32.xlu0 %v473, 112
    %v479 = vpop.permute.xlu0 %478
    %v480 = vsel %vm107, %v473, 0
    %v482 = vsel %vm107, %v479, 0
    %484 = vmatprep.subr.mxu0 0.0
    %485 = vmatpush1.xpose.msra.mxu0 %v482
    %486 = vmatprep.subr.mxu0 0.0
    %487 = vmatpush1.xpose.msra.mxu0 0.0
    %488 = vmatprep.subr.mxu0 0.0
    %489 = vmatpush1.xpose.msra.mxu0 0.0
    %490 = vmatprep.subr.mxu0 0.0
    %491 = vmatpush1.xpose.msra.mxu0 0.0
    %492 = vmatprep.subr.mxu0 0.0
    %493 = vmatpush1.xpose.msra.mxu0 0.0
    %494 = vmatprep.subr.mxu0 0.0
    %495 = vmatpush1.xpose.msra.mxu0 0.0
    %496 = vmatprep.subr.mxu0 0.0
    %497 = vmatpush1.xpose.msra.mxu0 0.0
    %498 = vmatprep.subr.mxu0 0.0
    %499 = vmatpush1.xpose.msra.mxu0 0.0
    %500 = vmatprep.subr.mxu0 0.0
    %501 = vmatpush1.xpose.msra.mxu0 0.0
    %502 = vmatprep.subr.mxu0 0.0
    %503 = vmatpush1.xpose.msra.mxu0 0.0
    %504 = vmatprep.subr.mxu0 0.0
    %505 = vmatpush1.xpose.msra.mxu0 0.0
    %506 = vmatprep.subr.mxu0 0.0
    %507 = vmatpush1.xpose.msra.mxu0 0.0
    %508 = vmatprep.subr.mxu0 0.0
    %509 = vmatpush1.xpose.msra.mxu0 0.0
    %510 = vmatprep.subr.mxu0 0.0
    %511 = vmatpush1.xpose.msra.mxu0 0.0
    %512 = vmatprep.subr.mxu0 0.0
    %513 = vmatpush1.xpose.msra.mxu0 0.0
    %514 = vmatprep.subr.mxu0 0.0
    %515 = vmatpush1.xpose.msra.mxu0 0.0
    %516 = vmatprep.subr.mxu0 0.0
    %517 = vmatpush1.xpose.msra.mxu0 0.0
    %518 = vmatprep.subr.mxu0 0.0
    %519 = vmatpush1.xpose.msra.mxu0 0.0
    %520 = vmatprep.subr.mxu0 0.0
    %521 = vmatpush1.xpose.msra.mxu0 0.0
    %522 = vmatprep.subr.mxu0 0.0
    %523 = vmatpush1.xpose.msra.mxu0 0.0
    %524 = vmatprep.subr.mxu0 0.0
    %525 = vmatpush1.xpose.msra.mxu0 0.0
    %526 = vmatprep.subr.mxu0 0.0
    %527 = vmatpush1.xpose.msra.mxu0 0.0
    %528 = vmatprep.subr.mxu0 0.0
    %529 = vmatpush1.xpose.msra.mxu0 0.0
    %530 = vmatprep.subr.mxu0 0.0
    %531 = vmatpush1.xpose.msra.mxu0 0.0
    %532 = vmatprep.subr.mxu0 0.0
    %533 = vmatpush1.xpose.msra.mxu0 0.0
    %534 = vmatprep.subr.mxu0 0.0
    %535 = vmatpush1.xpose.msra.mxu0 0.0
    %536 = vmatprep.subr.mxu0 0.0
    %537 = vmatpush1.xpose.msra.mxu0 0.0
    %538 = vmatprep.subr.mxu0 0.0
    %539 = vmatpush1.xpose.msra.mxu0 0.0
    %540 = vmatprep.subr.mxu0 0.0
    %541 = vmatpush1.xpose.msra.mxu0 0.0
    %542 = vmatprep.subr.mxu0 0.0
    %543 = vmatpush1.xpose.msra.mxu0 0.0
    %544 = vmatprep.subr.mxu0 0.0
    %545 = vmatpush1.xpose.msra.mxu0 0.0
    %546 = vmatprep.subr.mxu0 0.0
    %547 = vmatpush1.xpose.msra.mxu0 0.0
    %548 = vmatprep.mubr.f32.mxu0 0.0
    %549 = vmatmul.mubr.f32.gmra.mrb[0].mxu0 %v480
    %v550 = vpop.f32.mrb[0].mxu0
    %v551 = vadd.f32 0.0, %v550
    %v552 = vpop.f32.mrb[0].mxu0
    %553 = vdwg.mxu0
    %555 = vrot.lane.b32.xlu0 %v474, 112
    %v556 = vpop.permute.xlu0 %555
    %v557 = vsel %vm107, %v474, 0
    %v559 = vsel %vm107, %v556, 0
    %561 = vmatprep.subr.mxu0 0.0
    %562 = vmatpush1.xpose.msra.mxu0 %v559
    %563 = vmatprep.subr.mxu0 0.0
    %564 = vmatpush1.xpose.msra.mxu0 0.0
    %565 = vmatprep.subr.mxu0 0.0
    %566 = vmatpush1.xpose.msra.mxu0 0.0
    %567 = vmatprep.subr.mxu0 0.0
    %568 = vmatpush1.xpose.msra.mxu0 0.0
    %569 = vmatprep.subr.mxu0 0.0
    %570 = vmatpush1.xpose.msra.mxu0 0.0
    %571 = vmatprep.subr.mxu0 0.0
    %572 = vmatpush1.xpose.msra.mxu0 0.0
    %573 = vmatprep.subr.mxu0 0.0
    %574 = vmatpush1.xpose.msra.mxu0 0.0
    %575 = vmatprep.subr.mxu0 0.0
    %576 = vmatpush1.xpose.msra.mxu0 0.0
    %577 = vmatprep.subr.mxu0 0.0
    %578 = vmatpush1.xpose.msra.mxu0 0.0
    %579 = vmatprep.subr.mxu0 0.0
    %580 = vmatpush1.xpose.msra.mxu0 0.0
    %581 = vmatprep.subr.mxu0 0.0
    %582 = vmatpush1.xpose.msra.mxu0 0.0
    %583 = vmatprep.subr.mxu0 0.0
    %584 = vmatpush1.xpose.msra.mxu0 0.0
    %585 = vmatprep.subr.mxu0 0.0
    %586 = vmatpush1.xpose.msra.mxu0 0.0
    %587 = vmatprep.subr.mxu0 0.0
    %588 = vmatpush1.xpose.msra.mxu0 0.0
    %589 = vmatprep.subr.mxu0 0.0
    %590 = vmatpush1.xpose.msra.mxu0 0.0
    %591 = vmatprep.subr.mxu0 0.0
    %592 = vmatpush1.xpose.msra.mxu0 0.0
    %593 = vmatprep.subr.mxu0 0.0
    %594 = vmatpush1.xpose.msra.mxu0 0.0
    %595 = vmatprep.subr.mxu0 0.0
    %596 = vmatpush1.xpose.msra.mxu0 0.0
    %597 = vmatprep.subr.mxu0 0.0
    %598 = vmatpush1.xpose.msra.mxu0 0.0
    %599 = vmatprep.subr.mxu0 0.0
    %600 = vmatpush1.xpose.msra.mxu0 0.0
    %601 = vmatprep.subr.mxu0 0.0
    %602 = vmatpush1.xpose.msra.mxu0 0.0
    %603 = vmatprep.subr.mxu0 0.0
    %604 = vmatpush1.xpose.msra.mxu0 0.0
    %605 = vmatprep.subr.mxu0 0.0
    %606 = vmatpush1.xpose.msra.mxu0 0.0
    %607 = vmatprep.subr.mxu0 0.0
    %608 = vmatpush1.xpose.msra.mxu0 0.0
    %609 = vmatprep.subr.mxu0 0.0
    %610 = vmatpush1.xpose.msra.mxu0 0.0
    %611 = vmatprep.subr.mxu0 0.0
    %612 = vmatpush1.xpose.msra.mxu0 0.0
    %613 = vmatprep.subr.mxu0 0.0
    %614 = vmatpush1.xpose.msra.mxu0 0.0
    %615 = vmatprep.subr.mxu0 0.0
    %616 = vmatpush1.xpose.msra.mxu0 0.0
    %617 = vmatprep.subr.mxu0 0.0
    %618 = vmatpush1.xpose.msra.mxu0 0.0
    %619 = vmatprep.subr.mxu0 0.0
    %620 = vmatpush1.xpose.msra.mxu0 0.0
    %621 = vmatprep.subr.mxu0 0.0
    %622 = vmatpush1.xpose.msra.mxu0 0.0
    %623 = vmatprep.subr.mxu0 0.0
    %624 = vmatpush1.xpose.msra.mxu0 0.0
    %625 = vmatprep.mubr.f32.mxu0 0.0
    %626 = vmatmul.mubr.f32.gmra.mrb[0].mxu0 %v557
    %v627 = vpop.f32.mrb[0].mxu0
    %v628 = vadd.f32 0.0, %v627
    %v629 = vpop.f32.mrb[0].mxu0
    %630 = vdwg.mxu0
    %v631 = vlaneseq
    %v632 = vshrl.u32 %v631, 7
    %v633 = vlaneseq
    %v634 = vand.u32 %v633, 127
    %vm635 = vcmp.eq.s32.totalorder %v632, %v634
    %v636 = vsel %vm635, -inf, %v551
    %v637 = vsel %vm635, -inf, %v628
    %vm638 = vcmask 27648
    %v639 = vsel %vm638, %v636, -inf
    %640 = vmax.xlane.f32.xlu0 %v639
    %v641 = vpop.xlane.xlu0 %640
    %v642 = vsel %vm638, %v637, -inf
    %643 = vmax.xlane.f32.xlu0 %v642
    %v644 = vpop.xlane.xlu0 %643
    %v645 = vsub.f32 %v636, %v641
    %v646 = vsub.f32 %v637, %v644
    %v647 = vmul.f32 %v645, 1.442695
    %v648 = vpow.pop %v647
    %v649 = vmul.f32 %v646, 1.442695
    %v650 = vpow.pop %v649
    %v651 = vsel %vm638, %v648, 0.0
    %652 = vadd.xlane.f32.xlu0 %v651
    %v653 = vpop.xlane.xlu0 %652
    %v654 = vsel %vm638, %v650, 0.0
    %655 = vadd.xlane.f32.xlu0 %v654
    %v656 = vpop.xlane.xlu0 %655
    %v657 = vrcp.pop %v653
    %v658 = vrcp.pop %v656
    %v659 = vmul.f32 %v648, %v657
    %v660 = vmul.f32 %v650, %v658
    %662 = vrot.lane.b32.xlu0 %v475, 96
    %v663 = vpop.permute.xlu0 %662
    %vm664 = vcmask 31744
    %v666 = vsel %vm664, %v659, 0
    %vm668 = vcmask 1043456
    %v669 = vsel %vm668, %v663, 0
    %671 = vmatprep.subr.mxu0 0.0
    %672 = vmatpush1.msra.mxu0 %v669
    %673 = vmatprep.subr.mxu0 0.0
    %674 = vmatpush1.msra.mxu0 0.0
    %675 = vmatprep.subr.mxu0 0.0
    %676 = vmatpush1.msra.mxu0 0.0
    %677 = vmatprep.subr.mxu0 0.0
    %678 = vmatpush1.msra.mxu0 0.0
    %679 = vmatprep.subr.mxu0 0.0
    %680 = vmatpush1.msra.mxu0 0.0
    %681 = vmatprep.subr.mxu0 0.0
    %682 = vmatpush1.msra.mxu0 0.0
    %683 = vmatprep.subr.mxu0 0.0
    %684 = vmatpush1.msra.mxu0 0.0
    %685 = vmatprep.subr.mxu0 0.0
    %686 = vmatpush1.msra.mxu0 0.0
    %687 = vmatprep.subr.mxu0 0.0
    %688 = vmatpush1.msra.mxu0 0.0
    %689 = vmatprep.subr.mxu0 0.0
    %690 = vmatpush1.msra.mxu0 0.0
    %691 = vmatprep.subr.mxu0 0.0
    %692 = vmatpush1.msra.mxu0 0.0
    %693 = vmatprep.subr.mxu0 0.0
    %694 = vmatpush1.msra.mxu0 0.0
    %695 = vmatprep.subr.mxu0 0.0
    %696 = vmatpush1.msra.mxu0 0.0
    %697 = vmatprep.subr.mxu0 0.0
    %698 = vmatpush1.msra.mxu0 0.0
    %699 = vmatprep.subr.mxu0 0.0
    %700 = vmatpush1.msra.mxu0 0.0
    %701 = vmatprep.subr.mxu0 0.0
    %702 = vmatpush1.msra.mxu0 0.0
    %703 = vmatprep.subr.mxu0 0.0
    %704 = vmatpush1.msra.mxu0 0.0
    %705 = vmatprep.subr.mxu0 0.0
    %706 = vmatpush1.msra.mxu0 0.0
    %707 = vmatprep.subr.mxu0 0.0
    %708 = vmatpush1.msra.mxu0 0.0
    %709 = vmatprep.subr.mxu0 0.0
    %710 = vmatpush1.msra.mxu0 0.0
    %711 = vmatprep.subr.mxu0 0.0
    %712 = vmatpush1.msra.mxu0 0.0
    %713 = vmatprep.subr.mxu0 0.0
    %714 = vmatpush1.msra.mxu0 0.0
    %715 = vmatprep.subr.mxu0 0.0
    %716 = vmatpush1.msra.mxu0 0.0
    %717 = vmatprep.subr.mxu0 0.0
    %718 = vmatpush1.msra.mxu0 0.0
    %719 = vmatprep.subr.mxu0 0.0
    %720 = vmatpush1.msra.mxu0 0.0
    %721 = vmatprep.subr.mxu0 0.0
    %722 = vmatpush1.msra.mxu0 0.0
    %723 = vmatprep.subr.mxu0 0.0
    %724 = vmatpush1.msra.mxu0 0.0
    %725 = vmatprep.subr.mxu0 0.0
    %726 = vmatpush1.msra.mxu0 0.0
    %727 = vmatprep.subr.mxu0 0.0
    %728 = vmatpush1.msra.mxu0 0.0
    %729 = vmatprep.subr.mxu0 0.0
    %730 = vmatpush1.msra.mxu0 0.0
    %731 = vmatprep.subr.mxu0 0.0
    %732 = vmatpush1.msra.mxu0 0.0
    %733 = vmatprep.subr.mxu0 0.0
    %734 = vmatpush1.msra.mxu0 0.0
    %735 = vmatprep.mubr.f32.mxu0 0.0
    %736 = vmatmul.mubr.f32.gmra.mrb[0].mxu0 %v666
    %v737 = vpop.f32.mrb[0].mxu0
    %v738 = vadd.f32 0.0, %v737
    %v739 = vpop.f32.mrb[0].mxu0
    %740 = vdwg.mxu0
    %742 = vrot.lane.b32.xlu0 %v476, 96
    %v743 = vpop.permute.xlu0 %742
    %v745 = vsel %vm664, %v660, 0
    %v747 = vsel %vm668, %v743, 0
    %749 = vmatprep.subr.mxu0 0.0
    %750 = vmatpush1.msra.mxu0 %v747
    %751 = vmatprep.subr.mxu0 0.0
    %752 = vmatpush1.msra.mxu0 0.0
    %753 = vmatprep.subr.mxu0 0.0
    %754 = vmatpush1.msra.mxu0 0.0
    %755 = vmatprep.subr.mxu0 0.0
    %756 = vmatpush1.msra.mxu0 0.0
    %757 = vmatprep.subr.mxu0 0.0
    %758 = vmatpush1.msra.mxu0 0.0
    %759 = vmatprep.subr.mxu0 0.0
    %760 = vmatpush1.msra.mxu0 0.0
    %761 = vmatprep.subr.mxu0 0.0
    %762 = vmatpush1.msra.mxu0 0.0
    %763 = vmatprep.subr.mxu0 0.0
    %764 = vmatpush1.msra.mxu0 0.0
    %765 = vmatprep.subr.mxu0 0.0
    %766 = vmatpush1.msra.mxu0 0.0
    %767 = vmatprep.subr.mxu0 0.0
    %768 = vmatpush1.msra.mxu0 0.0
    %769 = vmatprep.subr.mxu0 0.0
    %770 = vmatpush1.msra.mxu0 0.0
    %771 = vmatprep.subr.mxu0 0.0
    %772 = vmatpush1.msra.mxu0 0.0
    %773 = vmatprep.subr.mxu0 0.0
    %774 = vmatpush1.msra.mxu0 0.0
    %775 = vmatprep.subr.mxu0 0.0
    %776 = vmatpush1.msra.mxu0 0.0
    %777 = vmatprep.subr.mxu0 0.0
    %778 = vmatpush1.msra.mxu0 0.0
    %779 = vmatprep.subr.mxu0 0.0
    %780 = vmatpush1.msra.mxu0 0.0
    %781 = vmatprep.subr.mxu0 0.0
    %782 = vmatpush1.msra.mxu0 0.0
    %783 = vmatprep.subr.mxu0 0.0
    %784 = vmatpush1.msra.mxu0 0.0
    %785 = vmatprep.subr.mxu0 0.0
    %786 = vmatpush1.msra.mxu0 0.0
    %787 = vmatprep.subr.mxu0 0.0
    %788 = vmatpush1.msra.mxu0 0.0
    %789 = vmatprep.subr.mxu0 0.0
    %790 = vmatpush1.msra.mxu0 0.0
    %791 = vmatprep.subr.mxu0 0.0
    %792 = vmatpush1.msra.mxu0 0.0
    %793 = vmatprep.subr.mxu0 0.0
    %794 = vmatpush1.msra.mxu0 0.0
    %795 = vmatprep.subr.mxu0 0.0
    %796 = vmatpush1.msra.mxu0 0.0
    %797 = vmatprep.subr.mxu0 0.0
    %798 = vmatpush1.msra.mxu0 0.0
    %799 = vmatprep.subr.mxu0 0.0
    %800 = vmatpush1.msra.mxu0 0.0
    %801 = vmatprep.subr.mxu0 0.0
    %802 = vmatpush1.msra.mxu0 0.0
    %803 = vmatprep.subr.mxu0 0.0
    %804 = vmatpush1.msra.mxu0 0.0
    %805 = vmatprep.subr.mxu0 0.0
    %806 = vmatpush1.msra.mxu0 0.0
    %807 = vmatprep.subr.mxu0 0.0
    %808 = vmatpush1.msra.mxu0 0.0
    %809 = vmatprep.subr.mxu0 0.0
    %810 = vmatpush1.msra.mxu0 0.0
    %811 = vmatprep.subr.mxu0 0.0
    %812 = vmatpush1.msra.mxu0 0.0
    %813 = vmatprep.mubr.f32.mxu0 0.0
    %814 = vmatmul.mubr.f32.gmra.mrb[0].mxu0 %v745
    %v815 = vpop.f32.mrb[0].mxu0
    %v816 = vadd.f32 0.0, %v815
    %v817 = vpop.f32.mrb[0].mxu0
    %818 = vdwg.mxu0
    %820 = vrot.lane.b32.xlu0 %v738, 40
    %v821 = vpop.permute.xlu0 %820
    %vm823 = vcmask 453952
    %824 = vst.msk [vmem:[#allocation11] sm:$0xf] %vm823, %v821
    %826 = vrot.lane.b32.xlu0 %v816, 40
    %v827 = vpop.permute.xlu0 %826
    %829 = vst.msk [vmem:[#allocation11 + $0x4] sm:$0xf] %vm823, %v827
    %v830 = vld [vmem:[#allocation11] sm:$0xff]
    %v831 = vld [vmem:[%s10] sm:$0xff]
    %v832 = vld [vmem:[%s10 + $0x8] sm:$0xff]
    %v833 = vld [vmem:[%s10 + $0x10] sm:$0xff]
    %v834 = vld [vmem:[%s10 + $0x18] sm:$0xff]
    %v835 = vld [vmem:[%s11] sm:$0xff]
    %v836 = vld [vmem:[%s11 + $0x8] sm:$0xff]
    %838 = vrot.lane.b32.xlu0 %v830, 88
    %v839 = vpop.permute.xlu0 %838
    %v840 = vsel %vm107, %v839, 0
    %842 = vmatprep.subr.mxu0 0.0
    %843 = vmatpush1.msra.mxu0 %v835
    %844 = vmatprep.subr.mxu0 0.0
    %845 = vmatpush1.msra.mxu0 %v836
    %846 = vmatprep.subr.mxu0 0.0
    %847 = vmatpush1.msra.mxu0 0.0
    %848 = vmatprep.subr.mxu0 0.0
    %849 = vmatpush1.msra.mxu0 0.0
    %850 = vmatprep.subr.mxu0 0.0
    %851 = vmatpush1.msra.mxu0 0.0
    %852 = vmatprep.subr.mxu0 0.0
    %853 = vmatpush1.msra.mxu0 0.0
    %854 = vmatprep.subr.mxu0 0.0
    %855 = vmatpush1.msra.mxu0 0.0
    %856 = vmatprep.subr.mxu0 0.0
    %857 = vmatpush1.msra.mxu0 0.0
    %858 = vmatprep.subr.mxu0 0.0
    %859 = vmatpush1.msra.mxu0 0.0
    %860 = vmatprep.subr.mxu0 0.0
    %861 = vmatpush1.msra.mxu0 0.0
    %862 = vmatprep.subr.mxu0 0.0
    %863 = vmatpush1.msra.mxu0 0.0
    %864 = vmatprep.subr.mxu0 0.0
    %865 = vmatpush1.msra.mxu0 0.0
    %866 = vmatprep.subr.mxu0 0.0
    %867 = vmatpush1.msra.mxu0 0.0
    %868 = vmatprep.subr.mxu0 0.0
    %869 = vmatpush1.msra.mxu0 0.0
    %870 = vmatprep.subr.mxu0 0.0
    %871 = vmatpush1.msra.mxu0 0.0
    %872 = vmatprep.subr.mxu0 0.0
    %873 = vmatpush1.msra.mxu0 0.0
    %874 = vmatprep.subr.mxu0 0.0
    %875 = vmatpush1.msra.mxu0 0.0
    %876 = vmatprep.subr.mxu0 0.0
    %877 = vmatpush1.msra.mxu0 0.0
    %878 = vmatprep.subr.mxu0 0.0
    %879 = vmatpush1.msra.mxu0 0.0
    %880 = vmatprep.subr.mxu0 0.0
    %881 = vmatpush1.msra.mxu0 0.0
    %882 = vmatprep.subr.mxu0 0.0
    %883 = vmatpush1.msra.mxu0 0.0
    %884 = vmatprep.subr.mxu0 0.0
    %885 = vmatpush1.msra.mxu0 0.0
    %886 = vmatprep.subr.mxu0 0.0
    %887 = vmatpush1.msra.mxu0 0.0
    %888 = vmatprep.subr.mxu0 0.0
    %889 = vmatpush1.msra.mxu0 0.0
    %890 = vmatprep.subr.mxu0 0.0
    %891 = vmatpush1.msra.mxu0 0.0
    %892 = vmatprep.subr.mxu0 0.0
    %893 = vmatpush1.msra.mxu0 0.0
    %894 = vmatprep.subr.mxu0 0.0
    %895 = vmatpush1.msra.mxu0 0.0
    %896 = vmatprep.subr.mxu0 0.0
    %897 = vmatpush1.msra.mxu0 0.0
    %898 = vmatprep.subr.mxu0 0.0
    %899 = vmatpush1.msra.mxu0 0.0
    %900 = vmatprep.subr.mxu0 0.0
    %901 = vmatpush1.msra.mxu0 0.0
    %902 = vmatprep.subr.mxu0 0.0
    %903 = vmatpush1.msra.mxu0 0.0
    %904 = vmatprep.subr.mxu0 0.0
    %905 = vmatpush1.msra.mxu0 0.0
    %906 = vmatprep.mubr.f32.mxu0 0.0
    %907 = vmatmul.mubr.f32.gmra.mrb[0].mxu0 %v840
    %v908 = vpop.f32.mrb[0].mxu0
    %v909 = vadd.f32 0.0, %v908
    %v910 = vpop.f32.mrb[0].mxu0
    %911 = vdwg.mxu0
    %912 = vmatprep.subr.mxu0 0.0
    %913 = vmatpush1.msra.mxu0 %v831
    %914 = vmatprep.subr.mxu0 0.0
    %915 = vmatpush1.msra.mxu0 %v832
    %916 = vmatprep.subr.mxu0 0.0
    %917 = vmatpush1.msra.mxu0 %v833
    %918 = vmatprep.subr.mxu0 0.0
    %919 = vmatpush1.msra.mxu0 %v834
    %920 = vmatprep.subr.mxu0 0.0
    %921 = vmatpush1.msra.mxu0 0.0
    %922 = vmatprep.subr.mxu0 0.0
    %923 = vmatpush1.msra.mxu0 0.0
    %924 = vmatprep.subr.mxu0 0.0
    %925 = vmatpush1.msra.mxu0 0.0
    %926 = vmatprep.subr.mxu0 0.0
    %927 = vmatpush1.msra.mxu0 0.0
    %928 = vmatprep.subr.mxu0 0.0
    %929 = vmatpush1.msra.mxu0 0.0
    %930 = vmatprep.subr.mxu0 0.0
    %931 = vmatpush1.msra.mxu0 0.0
    %932 = vmatprep.subr.mxu0 0.0
    %933 = vmatpush1.msra.mxu0 0.0
    %934 = vmatprep.subr.mxu0 0.0
    %935 = vmatpush1.msra.mxu0 0.0
    %936 = vmatprep.subr.mxu0 0.0
    %937 = vmatpush1.msra.mxu0 0.0
    %938 = vmatprep.subr.mxu0 0.0
    %939 = vmatpush1.msra.mxu0 0.0
    %940 = vmatprep.subr.mxu0 0.0
    %941 = vmatpush1.msra.mxu0 0.0
    %942 = vmatprep.subr.mxu0 0.0
    %943 = vmatpush1.msra.mxu0 0.0
    %944 = vmatprep.subr.mxu0 0.0
    %945 = vmatpush1.msra.mxu0 0.0
    %946 = vmatprep.subr.mxu0 0.0
    %947 = vmatpush1.msra.mxu0 0.0
    %948 = vmatprep.subr.mxu0 0.0
    %949 = vmatpush1.msra.mxu0 0.0
    %950 = vmatprep.subr.mxu0 0.0
    %951 = vmatpush1.msra.mxu0 0.0
    %952 = vmatprep.subr.mxu0 0.0
    %953 = vmatpush1.msra.mxu0 0.0
    %954 = vmatprep.subr.mxu0 0.0
    %955 = vmatpush1.msra.mxu0 0.0
    %956 = vmatprep.subr.mxu0 0.0
    %957 = vmatpush1.msra.mxu0 0.0
    %958 = vmatprep.subr.mxu0 0.0
    %959 = vmatpush1.msra.mxu0 0.0
    %960 = vmatprep.subr.mxu0 0.0
    %961 = vmatpush1.msra.mxu0 0.0
    %962 = vmatprep.subr.mxu0 0.0
    %963 = vmatpush1.msra.mxu0 0.0
    %964 = vmatprep.subr.mxu0 0.0
    %965 = vmatpush1.msra.mxu0 0.0
    %966 = vmatprep.subr.mxu0 0.0
    %967 = vmatpush1.msra.mxu0 0.0
    %968 = vmatprep.subr.mxu0 0.0
    %969 = vmatpush1.msra.mxu0 0.0
    %970 = vmatprep.subr.mxu0 0.0
    %971 = vmatpush1.msra.mxu0 0.0
    %972 = vmatprep.subr.mxu0 0.0
    %973 = vmatpush1.msra.mxu0 0.0
    %974 = vmatprep.subr.mxu0 0.0
    %975 = vmatpush1.msra.mxu0 0.0
    %976 = vmatprep.mubr.f32.mxu0 0.0
    %977 = vmatmul.mubr.f32.gmra.mrb[0].mxu0 %v394
    %v978 = vpop.f32.mrb[0].mxu0
    %v979 = vadd.f32 %v909, %v978
    %v980 = vpop.f32.mrb[0].mxu0
    %981 = vdwg.mxu0
    %v982 = vld [vmem:[%s12] sm:$0x1]
    %v984 = vlaneseq
    %v985 = vshrl.u32 %v984, 7
    %v986 = vsub.s32 0, %v985
    %v987 = vrot.slane %v982, %v986
    %v989 = vadd.f32 %v979, %v987
    %vm990 = vcmask 64512
    %991 = vst.msk [vmem:[#allocation11] sm:$0xff] %vm990, %v989
    %vm992 = vcmask 1048000
    %993 = vst.msk [vmem:[#allocation11] sm:$0xff] %vm992, 0.0
    // Predicated region
    $region70: #{tpu_custom_call.1} parent=1 // pred_check
      _
    $region71: #{tpu_custom_call.1} parent=1 // pred_check_branch
      %995 = sbr.rel (0) target = $region73
    $region72: #{tpu_custom_call.1} parent=1 // pred_region
      %s997 = ssub.s32 128, 128
      %998 = vsyncadd [#allocation5], %s997
      %s1000 = sshll.u32 [#allocation11], 4
      %s1001 = int_to_ptr.vmem [resolvable:$true] %s1000
      %1003 = dma.vmem_to_hbm [thread:$0]  %s1001, 128, %s13, [#allocation5]
    $region73: #{tpu_custom_call.1} parent=1 // pred_fallthru
      _
    // Predicated region
    $region74: #{tpu_custom_call.1} parent=1 // pred_check
      _
    $region75: #{tpu_custom_call.1} parent=1 // pred_check_branch
      %1005 = sbr.rel (0) target = $region77
    $region76: #{tpu_custom_call.1} parent=1 // pred_region
      %1006 = dma.done [#allocation5], 128
    $region77: #{tpu_custom_call.1} parent=1 // pred_fallthru
      _
    %1007 = vsyncpa [#allocation4], 1
    %1008 = vsyncpa [#allocation7], 1
    %1009 = vsyncpa [#allocation10], 1
    %1010 = vsyncpa [#allocation5], 1

</llo_original>
